<compile_context>
chip_gen: v7x
topology: tpu7x:2x2x1
jax: 0.10.0
libtpu: 0.0.40
codegen_flags: <defaults>
</compile_context>

<pallas_src>
import jax
import jax.numpy as jnp
from jax.experimental import pallas as pl
from jax.experimental.pallas import tpu as pltpu


_LANE = 128
_SUBLANE = 8
_NUM_PARALLEL = 2                        # leading parallel axis (2 TCs on v7x)
_TILE_BUDGET_BYTES = 16 * 1024 * 1024    # budget for the double-buffered logits tile
_MAX_TM = 1024


def _round_up(x, m):
    return ((x + m - 1) // m) * m


def _wce_per_class_kernel(w_ref, x_ref, y_ref, loss_ref, wout_ref,
                          loss_acc, cnt_acc):
    """Grid = (P, num_inner); each step handles a (tm, C) tile of logits."""
    i = pl.program_id(1)                 # reduction ("arbitrary") axis

    @pl.when(i == 0)
    def _init():
        loss_acc[...] = jnp.zeros_like(loss_acc)
        cnt_acc[...] = jnp.zeros_like(cnt_acc)

    x = x_ref[...].astype(jnp.float32)   # (tm, C)  softmax math in f32
    y = y_ref[...]                       # (tm, 1)  int32 labels (-1 for padded rows)
    w = w_ref[...]                       # (1, C)   f32 class weights (0 for padded classes)

    tm, c = x.shape
    col = jax.lax.broadcasted_iota(jnp.int32, (tm, c), 1)
    onehot = col == y                    # padded rows (y = -1) never match any column

    # Numerically stable log-sum-exp per row.
    m = jnp.max(x, axis=-1, keepdims=True)                               # (tm, 1)
    lse = jnp.log(jnp.sum(jnp.exp(x - m), axis=-1, keepdims=True)) + m   # (tm, 1)

    # Fused gather + per-class scatter:
    #   onehot[i,c] * w[c] * (lse_i - x[i,c]) == (c == y_i) * w[y_i] * (-log p_i[y_i])
    loss_contrib = jnp.where(onehot, w * (lse - x), 0.0)                 # (tm, C)
    cnt_contrib = onehot.astype(jnp.float32)                             # (tm, C)

    # Vector partial accumulation: fold tm rows onto 8 sublanes with pure vreg
    # adds; the cross-sublane reduction is deferred to the epilogue.
    loss_acc[...] += jnp.sum(loss_contrib.reshape(tm // _SUBLANE, _SUBLANE, c), axis=0)
    cnt_acc[...] += jnp.sum(cnt_contrib.reshape(tm // _SUBLANE, _SUBLANE, c), axis=0)

    @pl.when(i == pl.num_programs(1) - 1)
    def _finalize():
        per_class_loss = jnp.sum(loss_acc[...], axis=0, keepdims=True)   # (1, C)
        per_class_cnt = jnp.sum(cnt_acc[...], axis=0, keepdims=True)     # (1, C)
        loss_ref[...] = per_class_loss.reshape(loss_ref.shape)
        wout_ref[...] = (per_class_cnt * w).reshape(wout_ref.shape)


@jax.jit
def weighted_cross_entropy_per_class(inputs, labels, weights):
    """Returns (per-class summed weighted CE losses [C], counts * weights [C])."""
    n, c = inputs.shape
    c_pad = _round_up(max(c, _LANE), _LANE)
    itemsize = jnp.dtype(inputs.dtype).itemsize
    p_dim = _NUM_PARALLEL

    # Row tile: largest multiple of 8 such that the double-buffered (tm, C_pad)
    # logits tile stays within the budget, leaving well over half of the 32 MiB
    # scoped-VMEM limit free on every generation (v5e/v6e/v7x).
    tm = _TILE_BUDGET_BYTES // (2 * c_pad * itemsize)
    tm = min(tm, _MAX_TM, _round_up(-(-n // p_dim), _SUBLANE))
    tm = max(_SUBLANE, (tm // _SUBLANE) * _SUBLANE)

    n_pad = _round_up(n, p_dim * tm)
    num_inner = n_pad // (p_dim * tm)

    # Pad classes with very negative logits / zero weights; pad rows with zero
    # logits and label -1 (matches no class -> contributes nothing).
    x = inputs
    if c_pad != c:
        x = jnp.pad(x, ((0, 0), (0, c_pad - c)), constant_values=-1e30)
    if n_pad != n:
        x = jnp.pad(x, ((0, n_pad - n), (0, 0)))
    y = jnp.pad(labels.astype(jnp.int32), (0, n_pad - n), constant_values=-1)
    y = y.reshape(n_pad, 1)
    w = jnp.pad(weights.astype(jnp.float32), (0, c_pad - c)).reshape(1, c_pad)

    loss_p, wout_p = pl.pallas_call(
        _wce_per_class_kernel,
        out_shape=(
            jax.ShapeDtypeStruct((p_dim, 1, c_pad), jnp.float32),
            jax.ShapeDtypeStruct((p_dim, 1, c_pad), jnp.float32),
        ),
        grid_spec=pltpu.PrefetchScalarGridSpec(
            num_scalar_prefetch=0,
            grid=(p_dim, num_inner),
            in_specs=[
                pl.BlockSpec((1, c_pad), lambda p, i: (0, 0)),                    # class weights (resident)
                pl.BlockSpec((tm, c_pad), lambda p, i: (p * num_inner + i, 0)),   # logits tile
                pl.BlockSpec((tm, 1), lambda p, i: (p * num_inner + i, 0)),       # labels tile
            ],
            out_specs=[
                pl.BlockSpec((1, 1, c_pad), lambda p, i: (p, 0, 0)),   # per-core partial losses
                pl.BlockSpec((1, 1, c_pad), lambda p, i: (p, 0, 0)),   # per-core partial counts*w
            ],
            scratch_shapes=[
                pltpu.VMEM((_SUBLANE, c_pad), jnp.float32),            # loss accumulator
                pltpu.VMEM((_SUBLANE, c_pad), jnp.float32),            # count accumulator
            ],
        ),
        compiler_params=pltpu.CompilerParams(
            dimension_semantics=("parallel", "arbitrary"),
            vmem_limit_bytes=32 * 1024 * 1024,
        ),
    )(w, x, y)

    losses = jnp.sum(loss_p[:, 0, :], axis=0)[:c]
    class_weights = jnp.sum(wout_p[:, 0, :], axis=0)[:c]
    return losses, class_weights


def _reference(inputs, labels, weights):
    """Pure-JAX reference matching the PyTorch module's forward."""
    x = inputs.astype(jnp.float32)
    logp = jax.nn.log_softmax(x, axis=-1)
    nll = -jnp.take_along_axis(logp, labels[:, None], axis=-1)[:, 0]
    per_sample = weights[labels].astype(jnp.float32) * nll
    c = x.shape[1]
    loss_by_class = jnp.zeros((c,), jnp.float32).at[labels].add(per_sample)
    counts = jnp.zeros((c,), jnp.float32).at[labels].add(1.0)
    return loss_by_class, counts * weights.astype(jnp.float32)


if __name__ == "__main__":
    key = jax.random.PRNGKey(0)
    k1, k2, k3 = jax.random.split(key, 3)

    N, C = 16, 32  # small batch of 16 samples, 32 classes
    inputs = jax.random.normal(k1, (N, C), dtype=jnp.float32)
    labels = jax.random.randint(k2, (N,), 0, C, dtype=jnp.int32)
    weights = jax.random.uniform(k3, (C,), dtype=jnp.float32, minval=0.5, maxval=1.5)

    losses, class_weights = weighted_cross_entropy_per_class(inputs, labels, weights)
    jax.block_until_ready((losses, class_weights))

    ref_losses, ref_weights = _reference(inputs, labels, weights)
    assert losses.shape == (C,) and class_weights.shape == (C,)
    assert jnp.allclose(losses, ref_losses, rtol=1e-5, atol=1e-5), (losses, ref_losses)
    assert jnp.allclose(class_weights, ref_weights, rtol=1e-5, atol=1e-5), (class_weights, ref_weights)

    print("KERNEL_OK")
</pallas_src>

<mosaic_0001>
module attributes {stable_mosaic.version = 11 : i64} {
  func.func @_wce_per_class_kernel(%arg0: i32, %arg1: i32, %arg2: memref<1x128xf32, #tpu.memory_space<vmem>>, %arg3: memref<8x128xf32, #tpu.memory_space<vmem>>, %arg4: memref<8x1xi32, #tpu.memory_space<vmem>>, %arg5: memref<1x1x128xf32, #tpu.memory_space<vmem>>, %arg6: memref<1x1x128xf32, #tpu.memory_space<vmem>>, %arg7: memref<8x128xf32, #tpu.memory_space<vmem>>, %arg8: memref<8x128xf32, #tpu.memory_space<vmem>>) attributes {dimension_semantics = [#tpu.dimension_semantics<parallel>, #tpu.dimension_semantics<arbitrary>], iteration_bounds = array<i64: 2, 1>, scalar_prefetch = 0 : i64, scratch_operands = 2 : i64, tpu.core_type = #tpu.core_type<tc>, window_params = [{pipeline_mode = #tpu.pipeline_mode<synchronous>, transform_indices = @transform_0, window_bounds = array<i64: 1, 128>}, {transform_indices = @transform_1, window_bounds = array<i64: 8, 128>}, {transform_indices = @transform_2, window_bounds = array<i64: 8, 1>}, {transform_indices = @transform_3, window_bounds = array<i64: 1, 1, 128>}, {transform_indices = @transform_4, window_bounds = array<i64: 1, 1, 128>}]} {
    %c0_i32 = arith.constant 0 : i32
    %0 = arith.cmpi eq, %arg1, %c0_i32 : i32
    %1 = arith.extui %0 : i1 to i32
    %c0_i32_0 = arith.constant 0 : i32
    %2 = arith.cmpi ne, %1, %c0_i32_0 : i32
    scf.if %2 {
      %cst_20 = arith.constant 0.000000e+00 : f32
      %39 = vector.broadcast %cst_20 : f32 to vector<8x128xf32>
      %c0_21 = arith.constant 0 : index
      %c0_22 = arith.constant 0 : index
      %40 = vector.load %arg7[%c0_21, %c0_22] : memref<8x128xf32, #tpu.memory_space<vmem>>, vector<8x128xf32>
      tpu.vector_store %arg7[%c0_21, %c0_22], %39 {strides = array<i32>} : memref<8x128xf32, #tpu.memory_space<vmem>>, vector<8x128xf32>,
      %cst_23 = arith.constant 0.000000e+00 : f32
      %41 = vector.broadcast %cst_23 : f32 to vector<8x128xf32>
      %c0_24 = arith.constant 0 : index
      %c0_25 = arith.constant 0 : index
      %42 = vector.load %arg8[%c0_24, %c0_25] : memref<8x128xf32, #tpu.memory_space<vmem>>, vector<8x128xf32>
      tpu.vector_store %arg8[%c0_24, %c0_25], %41 {strides = array<i32>} : memref<8x128xf32, #tpu.memory_space<vmem>>, vector<8x128xf32>,
    } else {
    }
    %c0 = arith.constant 0 : index
    %c0_1 = arith.constant 0 : index
    %3 = vector.load %arg3[%c0, %c0_1] : memref<8x128xf32, #tpu.memory_space<vmem>>, vector<8x128xf32>
    %c0_2 = arith.constant 0 : index
    %c0_3 = arith.constant 0 : index
    %4 = vector.load %arg4[%c0_2, %c0_3] : memref<8x1xi32, #tpu.memory_space<vmem>>, vector<8x1xi32>
    %c0_4 = arith.constant 0 : index
    %c0_5 = arith.constant 0 : index
    %5 = vector.load %arg2[%c0_4, %c0_5] : memref<1x128xf32, #tpu.memory_space<vmem>>, vector<1x128xf32>
    %6 = tpu.iota {dimensions = array<i32: 1>} : vector<8x128xi32>
    %7 = vector.broadcast %4 : vector<8x1xi32> to vector<8x128xi32>
    %8 = arith.cmpi eq, %6, %7 : vector<8x128xi32>
    %cst = arith.constant dense<0xFF800000> : vector<8xf32>
    %9 = vector.multi_reduction <maximumf>, %3, %cst [1] : vector<8x128xf32> to vector<8xf32>
    %10 = vector.shape_cast %9 : vector<8xf32> to vector<8x1xf32>
    %11 = vector.broadcast %10 : vector<8x1xf32> to vector<8x128xf32>
    %12 = arith.subf %3, %11 : vector<8x128xf32>
    %13 = math.exp %12 : vector<8x128xf32>
    %cst_6 = arith.constant dense<0.000000e+00> : vector<8xf32>
    %14 = vector.multi_reduction <add>, %13, %cst_6 [1] : vector<8x128xf32> to vector<8xf32>
    %15 = vector.shape_cast %14 : vector<8xf32> to vector<8x1xf32>
    %16 = math.log %15 : vector<8x1xf32>
    %17 = arith.addf %16, %10 : vector<8x1xf32>
    %18 = vector.broadcast %17 : vector<8x1xf32> to vector<8x128xf32>
    %19 = arith.subf %18, %3 : vector<8x128xf32>
    %20 = vector.broadcast %5 : vector<1x128xf32> to vector<8x128xf32>
    %21 = arith.mulf %20, %19 : vector<8x128xf32>
    %cst_7 = arith.constant 0.000000e+00 : f32
    %22 = vector.broadcast %cst_7 : f32 to vector<8x128xf32>
    %23 = arith.select %8, %21, %22 : vector<8x128xi1>, vector<8x128xf32>
    %24 = arith.extui %8 : vector<8x128xi1> to vector<8x128xi32>
    %25 = arith.sitofp %24 : vector<8x128xi32> to vector<8x128xf32>
    %c0_8 = arith.constant 0 : index
    %c0_9 = arith.constant 0 : index
    %26 = vector.load %arg7[%c0_8, %c0_9] : memref<8x128xf32, #tpu.memory_space<vmem>>, vector<8x128xf32>
    %27 = vector.shape_cast %23 : vector<8x128xf32> to vector<1x8x128xf32>
    %cst_10 = arith.constant dense<0.000000e+00> : vector<8x128xf32>
    %28 = vector.multi_reduction <add>, %27, %cst_10 [0] : vector<1x8x128xf32> to vector<8x128xf32>
    %29 = arith.addf %26, %28 : vector<8x128xf32>
    %c0_11 = arith.constant 0 : index
    %c0_12 = arith.constant 0 : index
    %30 = vector.load %arg7[%c0_11, %c0_12] : memref<8x128xf32, #tpu.memory_space<vmem>>, vector<8x128xf32>
    tpu.vector_store %arg7[%c0_11, %c0_12], %29 {strides = array<i32>} : memref<8x128xf32, #tpu.memory_space<vmem>>, vector<8x128xf32>,
    %c0_13 = arith.constant 0 : index
    %c0_14 = arith.constant 0 : index
    %31 = vector.load %arg8[%c0_13, %c0_14] : memref<8x128xf32, #tpu.memory_space<vmem>>, vector<8x128xf32>
    %32 = vector.shape_cast %25 : vector<8x128xf32> to vector<1x8x128xf32>
    %cst_15 = arith.constant dense<0.000000e+00> : vector<8x128xf32>
    %33 = vector.multi_reduction <add>, %32, %cst_15 [0] : vector<1x8x128xf32> to vector<8x128xf32>
    %34 = arith.addf %31, %33 : vector<8x128xf32>
    %c0_16 = arith.constant 0 : index
    %c0_17 = arith.constant 0 : index
    %35 = vector.load %arg8[%c0_16, %c0_17] : memref<8x128xf32, #tpu.memory_space<vmem>>, vector<8x128xf32>
    tpu.vector_store %arg8[%c0_16, %c0_17], %34 {strides = array<i32>} : memref<8x128xf32, #tpu.memory_space<vmem>>, vector<8x128xf32>,
    %c0_i32_18 = arith.constant 0 : i32
    %36 = arith.cmpi eq, %arg1, %c0_i32_18 : i32
    %37 = arith.extui %36 : i1 to i32
    %c0_i32_19 = arith.constant 0 : i32
    %38 = arith.cmpi ne, %37, %c0_i32_19 : i32
    scf.if %38 {
      %c0_20 = arith.constant 0 : index
      %c0_21 = arith.constant 0 : index
      %39 = vector.load %arg7[%c0_20, %c0_21] : memref<8x128xf32, #tpu.memory_space<vmem>>, vector<8x128xf32>
      %cst_22 = arith.constant dense<0.000000e+00> : vector<128xf32>
      %40 = vector.multi_reduction <add>, %39, %cst_22 [0] : vector<8x128xf32> to vector<128xf32>
      %41 = vector.shape_cast %40 : vector<128xf32> to vector<1x128xf32>
      %c0_23 = arith.constant 0 : index
      %c0_24 = arith.constant 0 : index
      %42 = vector.load %arg8[%c0_23, %c0_24] : memref<8x128xf32, #tpu.memory_space<vmem>>, vector<8x128xf32>
      %cst_25 = arith.constant dense<0.000000e+00> : vector<128xf32>
      %43 = vector.multi_reduction <add>, %42, %cst_25 [0] : vector<8x128xf32> to vector<128xf32>
      %44 = vector.shape_cast %43 : vector<128xf32> to vector<1x128xf32>
      %45 = vector.shape_cast %41 : vector<1x128xf32> to vector<1x1x128xf32>
      %c0_26 = arith.constant 0 : index
      %c0_27 = arith.constant 0 : index
      %c0_28 = arith.constant 0 : index
      %46 = vector.load %arg5[%c0_26, %c0_27, %c0_28] : memref<1x1x128xf32, #tpu.memory_space<vmem>>, vector<1x1x128xf32>
      tpu.vector_store %arg5[%c0_26, %c0_27, %c0_28], %45 {strides = array<i32>} : memref<1x1x128xf32, #tpu.memory_space<vmem>>, vector<1x1x128xf32>,
      %47 = arith.mulf %44, %5 : vector<1x128xf32>
      %48 = vector.shape_cast %47 : vector<1x128xf32> to vector<1x1x128xf32>
      %c0_29 = arith.constant 0 : index
      %c0_30 = arith.constant 0 : index
      %c0_31 = arith.constant 0 : index
      %49 = vector.load %arg6[%c0_29, %c0_30, %c0_31] : memref<1x1x128xf32, #tpu.memory_space<vmem>>, vector<1x1x128xf32>
      tpu.vector_store %arg6[%c0_29, %c0_30, %c0_31], %48 {strides = array<i32>} : memref<1x1x128xf32, #tpu.memory_space<vmem>>, vector<1x1x128xf32>,
    } else {
    }
    return
  }
  func.func @transform_0(%arg0: i32, %arg1: i32) -> (i32, i32) {
    %c0_i32 = arith.constant 0 : i32
    %c0_i32_0 = arith.constant 0 : i32
    %c0_i32_1 = arith.constant 0 : i32
    return %c0_i32, %c0_i32_0 : i32, i32
  }
  func.func @transform_1(%arg0: i32, %arg1: i32) -> (i32, i32) {
    %c1_i32 = arith.constant 1 : i32
    %0 = arith.muli %arg0, %c1_i32 : i32
    %1 = arith.addi %0, %arg1 : i32
    %c0_i32 = arith.constant 0 : i32
    %c0_i32_0 = arith.constant 0 : i32
    return %1, %c0_i32 : i32, i32
  }
  func.func @transform_2(%arg0: i32, %arg1: i32) -> (i32, i32) {
    %c1_i32 = arith.constant 1 : i32
    %0 = arith.muli %arg0, %c1_i32 : i32
    %1 = arith.addi %0, %arg1 : i32
    %c0_i32 = arith.constant 0 : i32
    %c0_i32_0 = arith.constant 0 : i32
    return %1, %c0_i32 : i32, i32
  }
  func.func @transform_3(%arg0: i32, %arg1: i32) -> (i32, i32, i32) {
    %c0_i32 = arith.constant 0 : i32
    %c0_i32_0 = arith.constant 0 : i32
    %c0_i32_1 = arith.constant 0 : i32
    return %arg0, %c0_i32, %c0_i32_0 : i32, i32, i32
  }
  func.func @transform_4(%arg0: i32, %arg1: i32) -> (i32, i32, i32) {
    %c0_i32 = arith.constant 0 : i32
    %c0_i32_0 = arith.constant 0 : i32
    %c0_i32_1 = arith.constant 0 : i32
    return %arg0, %c0_i32, %c0_i32_0 : i32, i32, i32
  }
}

</mosaic_0001>

<llo_original>
// kernel: weighted_cross_entropy_per_class.1
$region0: #{weighted_cross_entropy_per_class.1}
  #allocation0 [shape = 'u32[]', space=smem, size = 0x4, offset = 0x4, fixed_abs, tag = 'smem constant byte address 0x4 - core index']
  #allocation1 [shape = 'u32[144,128]{1,0:T(1,128)}', space=vmem, size = 0x12000, scoped, tag = 'internal scratch']
  #allocation2 [shape = 'f32[8,128]{1,0:T(8,128)}', space=vmem, size = 0x1000, scoped, tag = 'scratch operand']
  #allocation3 [shape = 'f32[8,128]{1,0:T(8,128)}', space=vmem, size = 0x1000, scoped, tag = 'scratch operand']
  %s0 = inlined_call_operand.vmem [shape: f32[1,128], index: 0, kind: input, shape index: {}]
  %s1 = inlined_call_operand.vmem [shape: f32[16,128], index: 1, kind: input, shape index: {}]
  %s2 = inlined_call_operand.vmem [shape: s32[16,1], index: 2, kind: input, shape index: {}]
  %s3 = inlined_call_operand.vmem [shape: f32[2,1,128], index: 3, kind: output, shape index: {0}]
  %s4 = inlined_call_operand.vmem [shape: f32[2,1,128], index: 4, kind: output, shape index: {1}]
  %5 = xla_tuple %s3, %s4
  %s6 = sld [smem:[#allocation0]]
  $region61: #{weighted_cross_entropy_per_class.1} parent=0
    _
  %s8 = ssub.s32 1, %s6
  %s9 = scalar_select 0, %s8, %s6
  loop: start=0, step=1, limit=4
  $region2: #{weighted_cross_entropy_per_class.1} parent=0 // loop_pre_header
    _
  $region3: #{weighted_cross_entropy_per_class.1} parent=0 // loop_header
    %s11 = sphi 0, %s15
    %p12 = scmp.ge.s32.totalorder %s11, 4
    %s18 = sphi 0, %s30
    %s19 = sphi 0, %s26
    %s20 = sphi 0, %s18
    %s21 = sphi 0, %s19
    %s22 = sphi 0, %s20
    %s23 = sphi 0, %s21
    %s31 = sphi 0, %s31
    %s33 = sphi 0, %s31
    %s34 = sphi 0, %s33
    %s48 = sphi 0, %s34
    %s56 = sphi 0, %s58
    %s59 = sphi 0, %s56
    %s60 = sphi 0, %s59
    %s76 = sphi 0, %s60
    %s84 = sphi 0, %s86
    %s87 = sphi 0, %s84
    %s88 = sphi 0, %s87
    %s104 = sphi 0, %s88
    %s110 = sphi 0, %s112
    %s113 = sphi 0, %s110
    %s114 = sphi 0, %s113
    %s130 = sphi 0, %s114
    %s136 = sphi 0, %s138
    %s139 = sphi 0, %s136
    %s140 = sphi 0, %s139
    %s156 = sphi 0, %s140
  $region4: #{weighted_cross_entropy_per_class.1} parent=0 // loop_header_branch
    %14 = sbr.rel (%p12) target = $region8
  $region5: #{weighted_cross_entropy_per_class.1} parent=0 // loop_body
    %s16 = ssub.s32 %s11, 1
    %s17 = ssub.s32 %s11, 2
    %s24 = sadd.s32 1, %s19
    %p25 = scmp.ge.s32.totalorder %s24, 1
    %s26 = scalar_select %p25, 0, %s24
    %s27 = sadd.s32 1, %s18
    %s28 = scalar_select %p25, %s27, %s18
    %p29 = scmp.ge.s32.totalorder %s28, 2
    %s30 = scalar_select %p29, 0, %s28
    %s32 = sadd.s32 %s31, 1
    %p35 = scmp.eq.s32.totalorder %s11, 1
    %p36 = scmp.ne.s32.totalorder %s31, %s33
    %p37 = scmp.eq.s32.totalorder %s11, 0
    %p38 = por %p36, %p37
    %p39 = scmp.ne.s32.totalorder %s31, %s33
    %p40 = scmp.eq.s32.totalorder %s16, 1
    %p41 = por %p39, %p40
    %p42 = scmp.ne.s32.totalorder %s33, %s34
    %p43 = scmp.eq.s32.totalorder %s16, 0
    %p44 = por %p42, %p43
    %p45 = scmp.ne.s32.totalorder %s33, %s34
    %p46 = scmp.eq.s32.totalorder %s17, 1
    %p47 = por %p45, %p46
    %p49 = scmp.ne.s32.totalorder %s34, %s48
    %p50 = scmp.eq.s32.totalorder %s17, 0
    %p51 = por %p49, %p50
    %s52 = sadd.s32 %s18, %s19
    %s53 = sadd.s32 %s30, %s26
    %s54 = ssub.s32 %s52, %s53
    %p55 = scmp.eq.s32.totalorder %s54, 0
    %s57 = sadd.s32 %s56, 1
    %s58 = scalar_select %p55, %s56, %s57
    %p61 = pneg %p55
    %p62 = scmp.eq.s32.totalorder %s11, 1
    %p63 = por %p61, %p62
    %p64 = scmp.ne.s32.totalorder %s56, %s59
    %p65 = scmp.eq.s32.totalorder %s11, 0
    %p66 = por %p64, %p65
    %p67 = scmp.ne.s32.totalorder %s56, %s59
    %p68 = scmp.eq.s32.totalorder %s16, 1
    %p69 = por %p67, %p68
    %p70 = scmp.ne.s32.totalorder %s59, %s60
    %p71 = scmp.eq.s32.totalorder %s16, 0
    %p72 = por %p70, %p71
    %p73 = scmp.ne.s32.totalorder %s59, %s60
    %p74 = scmp.eq.s32.totalorder %s17, 1
    %p75 = por %p73, %p74
    %p77 = scmp.ne.s32.totalorder %s60, %s76
    %p78 = scmp.eq.s32.totalorder %s17, 0
    %p79 = por %p77, %p78
    %s80 = sadd.s32 %s18, %s19
    %s81 = sadd.s32 %s30, %s26
    %s82 = ssub.s32 %s80, %s81
    %p83 = scmp.eq.s32.totalorder %s82, 0
    %s85 = sadd.s32 %s84, 1
    %s86 = scalar_select %p83, %s84, %s85
    %p89 = pneg %p83
    %p90 = scmp.eq.s32.totalorder %s11, 1
    %p91 = por %p89, %p90
    %p92 = scmp.ne.s32.totalorder %s84, %s87
    %p93 = scmp.eq.s32.totalorder %s11, 0
    %p94 = por %p92, %p93
    %p95 = scmp.ne.s32.totalorder %s84, %s87
    %p96 = scmp.eq.s32.totalorder %s16, 1
    %p97 = por %p95, %p96
    %p98 = scmp.ne.s32.totalorder %s87, %s88
    %p99 = scmp.eq.s32.totalorder %s16, 0
    %p100 = por %p98, %p99
    %p101 = scmp.ne.s32.totalorder %s87, %s88
    %p102 = scmp.eq.s32.totalorder %s17, 1
    %p103 = por %p101, %p102
    %p105 = scmp.ne.s32.totalorder %s88, %s104
    %p106 = scmp.eq.s32.totalorder %s17, 0
    %p107 = por %p105, %p106
    %s108 = ssub.s32 %s18, %s30
    %p109 = scmp.eq.s32.totalorder %s108, 0
    %s111 = sadd.s32 %s110, 1
    %s112 = scalar_select %p109, %s110, %s111
    %p115 = pneg %p109
    %p116 = scmp.eq.s32.totalorder %s11, 1
    %p117 = por %p115, %p116
    %p118 = scmp.ne.s32.totalorder %s110, %s113
    %p119 = scmp.eq.s32.totalorder %s11, 0
    %p120 = por %p118, %p119
    %p121 = scmp.ne.s32.totalorder %s110, %s113
    %p122 = scmp.eq.s32.totalorder %s16, 1
    %p123 = por %p121, %p122
    %p124 = scmp.ne.s32.totalorder %s113, %s114
    %p125 = scmp.eq.s32.totalorder %s16, 0
    %p126 = por %p124, %p125
    %p127 = scmp.ne.s32.totalorder %s113, %s114
    %p128 = scmp.eq.s32.totalorder %s17, 1
    %p129 = por %p127, %p128
    %p131 = scmp.ne.s32.totalorder %s114, %s130
    %p132 = scmp.eq.s32.totalorder %s17, 0
    %p133 = por %p131, %p132
    %s134 = ssub.s32 %s18, %s30
    %p135 = scmp.eq.s32.totalorder %s134, 0
    %s137 = sadd.s32 %s136, 1
    %s138 = scalar_select %p135, %s136, %s137
    %p141 = pneg %p135
    %p142 = scmp.eq.s32.totalorder %s11, 1
    %p143 = por %p141, %p142
    %p144 = scmp.ne.s32.totalorder %s136, %s139
    %p145 = scmp.eq.s32.totalorder %s11, 0
    %p146 = por %p144, %p145
    %p147 = scmp.ne.s32.totalorder %s136, %s139
    %p148 = scmp.eq.s32.totalorder %s16, 1
    %p149 = por %p147, %p148
    %p150 = scmp.ne.s32.totalorder %s139, %s140
    %p151 = scmp.eq.s32.totalorder %s16, 0
    %p152 = por %p150, %p151
    %p153 = scmp.ne.s32.totalorder %s139, %s140
    %p154 = scmp.eq.s32.totalorder %s17, 1
    %p155 = por %p153, %p154
    %p157 = scmp.ne.s32.totalorder %s140, %s156
    %p158 = scmp.eq.s32.totalorder %s17, 0
    %p159 = por %p157, %p158
    %p160 = scmp.le.s32.totalorder 1, %s11
    %p161 = scmp.lt.s32.totalorder %s11, 3
    %p162 = pnand %p160, %p161
    %p163 = pneg %p162
    // Predicated region
    $region9: #{weighted_cross_entropy_per_class.1} parent=5 // pred_check
      _
    $region10: #{weighted_cross_entropy_per_class.1} parent=5 // pred_check_branch
      %165 = sbr.rel (%p162) target = $region12
    $region11: #{weighted_cross_entropy_per_class.1} parent=5 // pred_region
      %s166 = ssub.s32 %s11, 1
      // Predicated region
      $region13: #{weighted_cross_entropy_per_class.1} parent=11 // pred_check
        %p167 = pneg %p44
      $region14: #{weighted_cross_entropy_per_class.1} parent=11 // pred_check_branch
        %169 = sbr.rel (%p167) target = $region16
      $region15: #{weighted_cross_entropy_per_class.1} parent=11 // pred_region
        _
      $region16: #{weighted_cross_entropy_per_class.1} parent=11 // pred_fallthru
        _
    $region12: #{weighted_cross_entropy_per_class.1} parent=5 // pred_fallthru
      _
    %p170 = scmp.lt.s32.totalorder %s11, 2
    // Predicated region
    $region17: #{weighted_cross_entropy_per_class.1} parent=5 // pred_check
      %p171 = pneg %p170
    $region18: #{weighted_cross_entropy_per_class.1} parent=5 // pred_check_branch
      %173 = sbr.rel (%p171) target = $region20
    $region19: #{weighted_cross_entropy_per_class.1} parent=5 // pred_region
      // Predicated region
      $region21: #{weighted_cross_entropy_per_class.1} parent=19 // pred_check
        %p174 = pneg %p66
      $region22: #{weighted_cross_entropy_per_class.1} parent=19 // pred_check_branch
        %176 = sbr.rel (%p174) target = $region24
      $region23: #{weighted_cross_entropy_per_class.1} parent=19 // pred_region
        %s177 = sadd.s32 %s18, %s19
        %p178 = scmp.lt.s32.totalorder %s177, 1
        %s179 = scalar_select %p178, %s177, 1
        %s180 = smul.addr %s179, 8
        %s181 = scalar_lea.vmem %s1, %s180
        %s182 = sadd.s32 %s18, %s19
      $region24: #{weighted_cross_entropy_per_class.1} parent=19 // pred_fallthru
        _
      // Predicated region
      $region25: #{weighted_cross_entropy_per_class.1} parent=19 // pred_check
        %p183 = pneg %p94
      $region26: #{weighted_cross_entropy_per_class.1} parent=19 // pred_check_branch
        %185 = sbr.rel (%p183) target = $region28
      $region27: #{weighted_cross_entropy_per_class.1} parent=19 // pred_region
        %s186 = sadd.s32 %s18, %s19
        %p187 = scmp.lt.s32.totalorder %s186, 1
        %s188 = scalar_select %p187, %s186, 1
        %s189 = smul.addr %s188, 8
        %s190 = scalar_lea.vmem %s2, %s189
        %s191 = sadd.s32 %s18, %s19
      $region28: #{weighted_cross_entropy_per_class.1} parent=19 // pred_fallthru
        _
    $region20: #{weighted_cross_entropy_per_class.1} parent=5 // pred_fallthru
      _
    %p192 = scmp.le.s32.totalorder 1, %s11
    %p193 = scmp.lt.s32.totalorder %s11, 3
    %p194 = pnand %p192, %p193
    %p195 = pneg %p194
    // Predicated region
    $region29: #{weighted_cross_entropy_per_class.1} parent=5 // pred_check
      _
    $region30: #{weighted_cross_entropy_per_class.1} parent=5 // pred_check_branch
      %197 = sbr.rel (%p194) target = $region32
    $region31: #{weighted_cross_entropy_per_class.1} parent=5 // pred_region
      %s198 = ssub.s32 %s11, 1
      %p199 = pneg %p44
      %p200 = pneg %p41
      %s201 = sadd.s32 %s20, %s21
      %p202 = scmp.lt.s32.totalorder %s201, 1
      %s203 = scalar_select %p202, %s201, 1
      %s204 = smul.addr %s203, 8
      %s205 = scalar_lea.vmem %s1, %s204
      %p206 = pneg %p72
      %p207 = pneg %p69
      %s208 = sadd.s32 %s20, %s21
      %p209 = scmp.lt.s32.totalorder %s208, 1
      %s210 = scalar_select %p209, %s208, 1
      %s211 = smul.addr %s210, 8
      %s212 = scalar_lea.vmem %s2, %s211
      %p213 = pneg %p100
      %p214 = pneg %p97
      %p215 = pneg %p126
      %p216 = pneg %p123
      %p217 = scmp.lt.s32.totalorder %s20, 1
      %s218 = scalar_select %p217, %s20, 1
      %s219 = scalar_lea.vmem %s3, %s218
      %p220 = pneg %p152
      %p221 = pneg %p149
      %p222 = scmp.lt.s32.totalorder %s20, 1
      %s223 = scalar_select %p222, %s20, 1
      %s224 = scalar_lea.vmem %s4, %s223
      %s225 = sadd.s32 %s20, %s21
      %p226 = scmp.lt.s32.totalorder %s225, 1
      %s227 = scalar_select %p226, %s225, 1
      %s228 = smul.addr %s227, 8
      %s229 = scalar_lea.vmem %s1, %s228
      %s230 = sadd.s32 %s20, %s21
      %s231 = sadd.s32 %s20, %s21
      %p232 = scmp.lt.s32.totalorder %s231, 1
      %s233 = scalar_select %p232, %s231, 1
      %s234 = smul.addr %s233, 8
      %s235 = scalar_lea.vmem %s2, %s234
      %s236 = sadd.s32 %s20, %s21
      %p237 = scmp.lt.s32.totalorder %s20, 1
      %s238 = scalar_select %p237, %s20, 1
      %s239 = scalar_lea.vmem %s3, %s238
      %p240 = scmp.lt.s32.totalorder %s20, 1
      %s241 = scalar_select %p240, %s20, 1
      %s242 = scalar_lea.vmem %s4, %s241
      %p243 = scmp.eq.s32.totalorder %s21, 0
      // Predicated region
      $region33: #{weighted_cross_entropy_per_class.1} parent=31 // pred_check
        %p244 = pneg %p243
      $region34: #{weighted_cross_entropy_per_class.1} parent=31 // pred_check_branch
        %246 = sbr.rel (%p244) target = $region36
      $region35: #{weighted_cross_entropy_per_class.1} parent=31 // pred_region
        %247 = vst [vmem:[#allocation2] sm:$0xff] 0.0
        %248 = vst [vmem:[#allocation3] sm:$0xff] 0.0
      $region36: #{weighted_cross_entropy_per_class.1} parent=31 // pred_fallthru
        _
      %v249 = vld [vmem:[%s229] sm:$0xff]
      %v250 = vld [vmem:[%s235] sm:$0xff]
      %v251 = vld [vmem:[%s0] sm:$0x1]
      %v252 = vlaneseq
      %v253 = vand.u32 %v252, 127
      %254 = vset.pattern.permute.xlu0 0
      %255 = vperm.xlu0 %254, %v250
      %v256 = vpop.permute.xlu0 %255
      %vm257 = vcmp.eq.s32.totalorder %v253, %v256
      %258 = vmax.xlane.f32.xlu0 %v249
      %v259 = vpop.xlane.xlu0 %258
      %v260 = vsub.f32 %v249, %v259
      %v261 = vmul.f32 %v260, 1.442695
      %v262 = vpow.pop %v261
      %263 = vadd.xlane.f32.xlu0 %v262
      %v264 = vpop.xlane.xlu0 %263
      %v265 = vlog2.pop %v264
      %v266 = vmul.f32 %v265, 0.6931472
      %v267 = vadd.f32 %v266, %v259
      %v268 = vsub.f32 %v267, %v249
      %v270 = vlaneseq
      %v271 = vshrl.u32 %v270, 7
      %v272 = vsub.s32 0, %v271
      %v273 = vrot.slane %v251, %v272
      %v275 = vmul.f32 %v273, %v268
      %v276 = vsel %vm257, %v275, 0.0
      %v277 = vsel %vm257, 1, 0
      %v278 = vcvt.s32.f32 %v277
      %v279 = vld [vmem:[#allocation2] sm:$0xff]
      %v280 = vadd.f32 %v276, 0.0
      %v281 = vadd.f32 %v279, %v280
      %282 = vst [vmem:[#allocation2] sm:$0xff] %v281
      %v283 = vld [vmem:[#allocation3] sm:$0xff]
      %v284 = vadd.f32 %v278, 0.0
      %v285 = vadd.f32 %v283, %v284
      %286 = vst [vmem:[#allocation3] sm:$0xff] %v285
      // Predicated region
      $region37: #{weighted_cross_entropy_per_class.1} parent=31 // pred_check
        %p287 = pneg %p243
      $region38: #{weighted_cross_entropy_per_class.1} parent=31 // pred_check_branch
        %289 = sbr.rel (%p287) target = $region40
      $region39: #{weighted_cross_entropy_per_class.1} parent=31 // pred_region
        %v290 = vld [vmem:[#allocation2] sm:$0xff]
        %v291 = vrot.slane %v290, 4
        %v292 = vadd.f32 %v290, %v291
        %v293 = vrot.slane %v292, 2
        %v294 = vadd.f32 %v292, %v293
        %v295 = vrot.slane %v294, 1
        %v296 = vadd.f32 %v294, %v295
        %v297 = vld [vmem:[#allocation3] sm:$0xff]
        %v298 = vrot.slane %v297, 4
        %v299 = vadd.f32 %v297, %v298
        %v300 = vrot.slane %v299, 2
        %v301 = vadd.f32 %v299, %v300
        %v302 = vrot.slane %v301, 1
        %v303 = vadd.f32 %v301, %v302
        %304 = vst [vmem:[%s239] sm:$0x1] %v296
        %v305 = vmul.f32 %v303, %v251
        %306 = vst [vmem:[%s242] sm:$0x1] %v305
      $region40: #{weighted_cross_entropy_per_class.1} parent=31 // pred_fallthru
        _
      %p307 = scmp.lt.s32.totalorder %s20, 1
      %s308 = scalar_select %p307, %s20, 1
      %s309 = scalar_lea.vmem %s3, %s308
      %p310 = scmp.lt.s32.totalorder %s20, 1
      %s311 = scalar_select %p310, %s20, 1
      %s312 = scalar_lea.vmem %s4, %s311
      // Predicated region
      $region41: #{weighted_cross_entropy_per_class.1} parent=31 // pred_check
        %p313 = pneg %p123
      $region42: #{weighted_cross_entropy_per_class.1} parent=31 // pred_check_branch
        %315 = sbr.rel (%p313) target = $region44
      $region43: #{weighted_cross_entropy_per_class.1} parent=31 // pred_region
        _
      $region44: #{weighted_cross_entropy_per_class.1} parent=31 // pred_fallthru
        _
      // Predicated region
      $region45: #{weighted_cross_entropy_per_class.1} parent=31 // pred_check
        %p316 = pneg %p149
      $region46: #{weighted_cross_entropy_per_class.1} parent=31 // pred_check_branch
        %318 = sbr.rel (%p316) target = $region48
      $region47: #{weighted_cross_entropy_per_class.1} parent=31 // pred_region
        _
      $region48: #{weighted_cross_entropy_per_class.1} parent=31 // pred_fallthru
        _
    $region32: #{weighted_cross_entropy_per_class.1} parent=5 // pred_fallthru
      _
    %p319 = scmp.le.s32.totalorder 2, %s11
    // Predicated region
    $region49: #{weighted_cross_entropy_per_class.1} parent=5 // pred_check
      %p320 = pneg %p319
    $region50: #{weighted_cross_entropy_per_class.1} parent=5 // pred_check_branch
      %322 = sbr.rel (%p320) target = $region52
    $region51: #{weighted_cross_entropy_per_class.1} parent=5 // pred_region
      %s323 = ssub.s32 %s11, 2
      // Predicated region
      $region53: #{weighted_cross_entropy_per_class.1} parent=51 // pred_check
        %p324 = pneg %p129
      $region54: #{weighted_cross_entropy_per_class.1} parent=51 // pred_check_branch
        %326 = sbr.rel (%p324) target = $region56
      $region55: #{weighted_cross_entropy_per_class.1} parent=51 // pred_region
        %p327 = scmp.lt.s32.totalorder %s22, 1
        %s328 = scalar_select %p327, %s22, 1
        %s329 = scalar_lea.vmem %s3, %s328
      $region56: #{weighted_cross_entropy_per_class.1} parent=51 // pred_fallthru
        _
      // Predicated region
      $region57: #{weighted_cross_entropy_per_class.1} parent=51 // pred_check
        %p330 = pneg %p155
      $region58: #{weighted_cross_entropy_per_class.1} parent=51 // pred_check_branch
        %332 = sbr.rel (%p330) target = $region60
      $region59: #{weighted_cross_entropy_per_class.1} parent=51 // pred_region
        %p333 = scmp.lt.s32.totalorder %s22, 1
        %s334 = scalar_select %p333, %s22, 1
        %s335 = scalar_lea.vmem %s4, %s334
      $region60: #{weighted_cross_entropy_per_class.1} parent=51 // pred_fallthru
        _
    $region52: #{weighted_cross_entropy_per_class.1} parent=5 // pred_fallthru
      _
  $region6: #{weighted_cross_entropy_per_class.1} parent=0 // loop_footer
    %s15 = sadd.s32 1, %s11
  $region7: #{weighted_cross_entropy_per_class.1} parent=0 // loop_footer_branch
    %10 = sbr.rel target = $region3
  $region8: #{weighted_cross_entropy_per_class.1} parent=0 // loop_exit
    _

</llo_original>
